<compile_context>
chip_gen: v5e
topology: v5e:2x2
jax: 0.10.0
libtpu: 0.0.40
codegen_flags: <defaults>
</compile_context>

<pallas_src>
import functools
import math

import jax
import jax.numpy as jnp
from jax.experimental import pallas as pl
from jax.experimental.pallas import tpu as pltpu


# ----------------------------------------------------------------------------
# Fused MHA kernel: one batch element per grid step.
# ----------------------------------------------------------------------------
def _mha_kernel(q_ref, k_ref, v_ref, mask_ref,
                wq_ref, bq_ref, wk_ref, bk_ref, wv_ref, bv_ref,
                wo_ref, bo_ref, o_ref, *, num_heads, d_k):
    H = num_heads
    xq = q_ref[0]            # (Lq, D) f32
    xk = k_ref[0]            # (Lk, D) f32
    xv = v_ref[0]            # (Lk, D) f32
    mask = mask_ref[0]       # (1, Lk) f32, 1.0 == masked-out key position

    # Broadcast activations over the head axis once so every contraction below
    # is a plain batch-leading dot_general (no in-kernel reshape / transpose /
    # per-head slice / concat).
    qb = jnp.broadcast_to(xq, (H,) + xq.shape).astype(jnp.bfloat16)
    kb = jnp.broadcast_to(xk, (H,) + xk.shape).astype(jnp.bfloat16)
    vb = jnp.broadcast_to(xv, (H,) + xv.shape).astype(jnp.bfloat16)

    # Per-head projections: (H, L, D) x (H, D, d_k) -> (H, L, d_k), f32 accum.
    proj_dims = (((2,), (1,)), ((0,), (0,)))
    qh = jax.lax.dot_general(qb, wq_ref[...], proj_dims,
                             preferred_element_type=jnp.float32) + bq_ref[...]
    kh = jax.lax.dot_general(kb, wk_ref[...], proj_dims,
                             preferred_element_type=jnp.float32) + bk_ref[...]
    vh = jax.lax.dot_general(vb, wv_ref[...], proj_dims,
                             preferred_element_type=jnp.float32) + bv_ref[...]

    # Attention scores: (H, Lq, d_k) x (H, Lk, d_k) -> (H, Lq, Lk).
    score_dims = (((2,), (2,)), ((0,), (0,)))
    s = jax.lax.dot_general(qh.astype(jnp.bfloat16), kh.astype(jnp.bfloat16),
                            score_dims, preferred_element_type=jnp.float32)
    # Additive key-mask bias, computed once (not a per-head select).
    s = s * (1.0 / math.sqrt(d_k)) + (mask * -1e9)[None]

    # Softmax over keys, all in f32.
    m = jnp.max(s, axis=-1, keepdims=True)
    e = jnp.exp(s - m)
    denom = jnp.sum(e, axis=-1, keepdims=True)
    p = e * pl.reciprocal(denom, approx=True)
    # TODO(synk): attention dropout (p=0.1) is identity in eval mode, omitted.

    # Context: (H, Lq, Lk) x (H, Lk, d_k) -> (H, Lq, d_k).
    ctx_dims = (((2,), (1,)), ((0,), (0,)))
    ctx = jax.lax.dot_general(p.astype(jnp.bfloat16), vh.astype(jnp.bfloat16),
                              ctx_dims, preferred_element_type=jnp.float32)

    # Output projection with Wo pre-split to (H, d_k, D); the head "concat"
    # becomes a sum of per-head partial products over the head batch axis.
    out_dims = (((2,), (1,)), ((0,), (0,)))
    partial = jax.lax.dot_general(ctx.astype(jnp.bfloat16), wo_ref[...],
                                  out_dims, preferred_element_type=jnp.float32)
    out = jnp.sum(partial, axis=0) + bo_ref[...]          # (Lq, D)
    o_ref[0] = out.astype(o_ref.dtype)


# ----------------------------------------------------------------------------
# Wrapper: host-side weight re-layout (head split + bf16 cast) + pallas_call.
# ----------------------------------------------------------------------------
def movie_mcan_mha(q, k, v, mask, params, num_heads):
    B, Lq, D = q.shape
    Lk = k.shape[1]
    d_k = D // num_heads
    wq, bq, wk, bk, wv, bv, wo, bo = params

    # Split heads once on the host and down-cast matmul weights to bf16
    # (biases stay f32; they are added after the f32 accumulation).
    def split_in(w):                     # (D, D) -> (H, D, d_k)
        return jnp.transpose(w.reshape(D, num_heads, d_k), (1, 0, 2)).astype(jnp.bfloat16)

    def split_bias(b):                   # (D,) -> (H, 1, d_k)
        return b.reshape(num_heads, 1, d_k).astype(jnp.float32)

    wq_h, wk_h, wv_h = split_in(wq), split_in(wk), split_in(wv)
    bq_h, bk_h, bv_h = split_bias(bq), split_bias(bk), split_bias(bv)
    wo_h = wo.reshape(num_heads, d_k, D).astype(jnp.bfloat16)   # (H, d_k, D)
    bo_r = bo.reshape(1, D).astype(jnp.float32)

    mask3 = mask.reshape(B, 1, Lk).astype(jnp.float32)          # (B, 1, Lk)

    kernel = functools.partial(_mha_kernel, num_heads=num_heads, d_k=d_k)

    def full(shape):   # grid-invariant (weight) block
        return pl.BlockSpec(shape, lambda b: (0,) * len(shape))

    return pl.pallas_call(
        kernel,
        out_shape=jax.ShapeDtypeStruct((B, Lq, D), q.dtype),
        grid=(B,),
        in_specs=[
            pl.BlockSpec((1, Lq, D), lambda b: (b, 0, 0)),   # q
            pl.BlockSpec((1, Lk, D), lambda b: (b, 0, 0)),   # k
            pl.BlockSpec((1, Lk, D), lambda b: (b, 0, 0)),   # v
            pl.BlockSpec((1, 1, Lk), lambda b: (b, 0, 0)),   # mask
            full((num_heads, D, d_k)), full((num_heads, 1, d_k)),   # Wq, bq
            full((num_heads, D, d_k)), full((num_heads, 1, d_k)),   # Wk, bk
            full((num_heads, D, d_k)), full((num_heads, 1, d_k)),   # Wv, bv
            full((num_heads, d_k, D)), full((1, D)),                # Wo, bo
        ],
        out_specs=pl.BlockSpec((1, Lq, D), lambda b: (b, 0, 0)),
        compiler_params=pltpu.CompilerParams(
            dimension_semantics=("parallel",),
        ),
    )(q, k, v, mask3, wq_h, bq_h, wk_h, bk_h, wv_h, bv_h, wo_h, bo_r)


# ----------------------------------------------------------------------------
# Pure-JAX reference (mirrors the PyTorch forward) + synthetic param init.
# ----------------------------------------------------------------------------
def mha_reference(q, k, v, mask, params, num_heads):
    B, Lq, D = q.shape
    d_k = D // num_heads
    wq, bq, wk, bk, wv, bv, wo, bo = params

    def proj(x, w, b):
        y = x @ w + b                                    # (B, L, D)
        Bx, L, _ = y.shape
        return y.reshape(Bx, L, num_heads, d_k).transpose(0, 2, 1, 3)

    qh, kh, vh = proj(q, wq, bq), proj(k, wk, bk), proj(v, wv, bv)
    s = jnp.einsum('bhqd,bhkd->bhqk', qh, kh) / math.sqrt(d_k)
    s = jnp.where(mask[:, None, None, :] > 0.5, -1e9, s)
    p = jax.nn.softmax(s, axis=-1)
    ctx = jnp.einsum('bhqk,bhkd->bhqd', p, vh)
    ctx = ctx.transpose(0, 2, 1, 3).reshape(B, Lq, D)
    return ctx @ wo + bo


def init_params(key, dim):
    keys = jax.random.split(key, 8)
    lim = 1.0 / math.sqrt(dim)

    def lin(kw, kb):
        w = jax.random.uniform(kw, (dim, dim), jnp.float32, -lim, lim)
        b = jax.random.uniform(kb, (dim,), jnp.float32, -lim, lim)
        return w, b

    wq, bq = lin(keys[0], keys[1])
    wk, bk = lin(keys[2], keys[3])
    wv, bv = lin(keys[4], keys[5])
    wo, bo = lin(keys[6], keys[7])
    return (wq, bq, wk, bk, wv, bv, wo, bo)


if __name__ == "__main__":
    B, Lq, Lk, DIM, HEADS = 2, 8, 8, 32, 4

    key = jax.random.PRNGKey(0)
    kq, kk, kv, kp = jax.random.split(key, 4)
    q = jax.random.normal(kq, (B, Lq, DIM), jnp.float32)
    k = jax.random.normal(kk, (B, Lk, DIM), jnp.float32)
    v = jax.random.normal(kv, (B, Lk, DIM), jnp.float32)
    # mask: (B, Lk); 1.0 marks a masked-out key (mirrors PyTorch bool mask).
    mask = jnp.zeros((B, Lk), jnp.float32).at[:, -1].set(1.0)

    params = init_params(kp, DIM)

    out = movie_mcan_mha(q, k, v, mask, params, HEADS)
    out = jax.block_until_ready(out)
    assert out.shape == (B, Lq, DIM)

    ref = mha_reference(q, k, v, mask, params, HEADS)
    # bf16 MXU inputs + approx reciprocal -> modest tolerance vs f32 reference.
    if not bool(jnp.allclose(out, ref, atol=5e-2, rtol=5e-2)):
        err = float(jnp.max(jnp.abs(out - ref)))
        raise AssertionError(f"kernel mismatch vs reference, max abs err = {err}")
    print("KERNEL_OK")
</pallas_src>

<mosaic_0001>
module attributes {stable_mosaic.version = 11 : i64} {
  func.func @_mha_kernel(%arg0: i32, %arg1: memref<1x8x32xf32, #tpu.memory_space<vmem>>, %arg2: memref<1x8x32xf32, #tpu.memory_space<vmem>>, %arg3: memref<1x8x32xf32, #tpu.memory_space<vmem>>, %arg4: memref<1x1x8xf32, #tpu.memory_space<vmem>>, %arg5: memref<4x32x8xbf16, #tpu.memory_space<vmem>>, %arg6: memref<4x1x8xf32, #tpu.memory_space<vmem>>, %arg7: memref<4x32x8xbf16, #tpu.memory_space<vmem>>, %arg8: memref<4x1x8xf32, #tpu.memory_space<vmem>>, %arg9: memref<4x32x8xbf16, #tpu.memory_space<vmem>>, %arg10: memref<4x1x8xf32, #tpu.memory_space<vmem>>, %arg11: memref<4x8x32xbf16, #tpu.memory_space<vmem>>, %arg12: memref<1x32xf32, #tpu.memory_space<vmem>>, %arg13: memref<1x8x32xf32, #tpu.memory_space<vmem>>) attributes {dimension_semantics = [#tpu.dimension_semantics<parallel>], iteration_bounds = array<i64: 2>, scalar_prefetch = 0 : i64, scratch_operands = 0 : i64, tpu.core_type = #tpu.core_type<tc>, window_params = [{transform_indices = @transform_0, window_bounds = array<i64: 1, 8, 32>}, {transform_indices = @transform_1, window_bounds = array<i64: 1, 8, 32>}, {transform_indices = @transform_2, window_bounds = array<i64: 1, 8, 32>}, {transform_indices = @transform_3, window_bounds = array<i64: 1, 1, 8>}, {pipeline_mode = #tpu.pipeline_mode<synchronous>, transform_indices = @transform_4, window_bounds = array<i64: 4, 32, 8>}, {pipeline_mode = #tpu.pipeline_mode<synchronous>, transform_indices = @transform_5, window_bounds = array<i64: 4, 1, 8>}, {pipeline_mode = #tpu.pipeline_mode<synchronous>, transform_indices = @transform_6, window_bounds = array<i64: 4, 32, 8>}, {pipeline_mode = #tpu.pipeline_mode<synchronous>, transform_indices = @transform_7, window_bounds = array<i64: 4, 1, 8>}, {pipeline_mode = #tpu.pipeline_mode<synchronous>, transform_indices = @transform_8, window_bounds = array<i64: 4, 32, 8>}, {pipeline_mode = #tpu.pipeline_mode<synchronous>, transform_indices = @transform_9, window_bounds = array<i64: 4, 1, 8>}, {pipeline_mode = #tpu.pipeline_mode<synchronous>, transform_indices = @transform_10, window_bounds = array<i64: 4, 8, 32>}, {pipeline_mode = #tpu.pipeline_mode<synchronous>, transform_indices = @transform_11, window_bounds = array<i64: 1, 32>}, {transform_indices = @transform_12, window_bounds = array<i64: 1, 8, 32>}]} {
    %c0 = arith.constant 0 : index
    %c0_0 = arith.constant 0 : index
    %c0_1 = arith.constant 0 : index
    %0 = vector.load %arg1[%c0, %c0_0, %c0_1] : memref<1x8x32xf32, #tpu.memory_space<vmem>>, vector<1x8x32xf32>
    %1 = vector.shape_cast %0 : vector<1x8x32xf32> to vector<8x32xf32>
    %c0_2 = arith.constant 0 : index
    %c0_3 = arith.constant 0 : index
    %c0_4 = arith.constant 0 : index
    %2 = vector.load %arg2[%c0_2, %c0_3, %c0_4] : memref<1x8x32xf32, #tpu.memory_space<vmem>>, vector<1x8x32xf32>
    %3 = vector.shape_cast %2 : vector<1x8x32xf32> to vector<8x32xf32>
    %c0_5 = arith.constant 0 : index
    %c0_6 = arith.constant 0 : index
    %c0_7 = arith.constant 0 : index
    %4 = vector.load %arg3[%c0_5, %c0_6, %c0_7] : memref<1x8x32xf32, #tpu.memory_space<vmem>>, vector<1x8x32xf32>
    %5 = vector.shape_cast %4 : vector<1x8x32xf32> to vector<8x32xf32>
    %c0_8 = arith.constant 0 : index
    %c0_9 = arith.constant 0 : index
    %c0_10 = arith.constant 0 : index
    %6 = vector.load %arg4[%c0_8, %c0_9, %c0_10] : memref<1x1x8xf32, #tpu.memory_space<vmem>>, vector<1x1x8xf32>
    %7 = vector.shape_cast %6 : vector<1x1x8xf32> to vector<1x8xf32>
    %8 = vector.shape_cast %1 : vector<8x32xf32> to vector<1x8x32xf32>
    %9 = vector.broadcast %8 : vector<1x8x32xf32> to vector<4x8x32xf32>
    %10 = arith.truncf %9 : vector<4x8x32xf32> to vector<4x8x32xbf16>
    %11 = vector.shape_cast %3 : vector<8x32xf32> to vector<1x8x32xf32>
    %12 = vector.broadcast %11 : vector<1x8x32xf32> to vector<4x8x32xf32>
    %13 = arith.truncf %12 : vector<4x8x32xf32> to vector<4x8x32xbf16>
    %14 = vector.shape_cast %5 : vector<8x32xf32> to vector<1x8x32xf32>
    %15 = vector.broadcast %14 : vector<1x8x32xf32> to vector<4x8x32xf32>
    %16 = arith.truncf %15 : vector<4x8x32xf32> to vector<4x8x32xbf16>
    %c0_11 = arith.constant 0 : index
    %c0_12 = arith.constant 0 : index
    %c0_13 = arith.constant 0 : index
    %17 = vector.load %arg5[%c0_11, %c0_12, %c0_13] : memref<4x32x8xbf16, #tpu.memory_space<vmem>>, vector<4x32x8xbf16>
    %cst = arith.constant dense<0.000000e+00> : vector<4x8x8xf32>
    %18 = tpu.matmul %10, %17, %cst {dimension_numbers = #tpu.dot_dimension_numbers<[2], [1], [1], [2], [0, 0, 0, 1, 1, 2], [0], [0]>} : vector<4x8x32xbf16>, vector<4x32x8xbf16>, vector<4x8x8xf32> -> vector<4x8x8xf32>
    %c0_14 = arith.constant 0 : index
    %c0_15 = arith.constant 0 : index
    %c0_16 = arith.constant 0 : index
    %19 = vector.load %arg6[%c0_14, %c0_15, %c0_16] : memref<4x1x8xf32, #tpu.memory_space<vmem>>, vector<4x1x8xf32>
    %20 = vector.broadcast %19 : vector<4x1x8xf32> to vector<4x8x8xf32>
    %21 = arith.addf %18, %20 : vector<4x8x8xf32>
    %c0_17 = arith.constant 0 : index
    %c0_18 = arith.constant 0 : index
    %c0_19 = arith.constant 0 : index
    %22 = vector.load %arg7[%c0_17, %c0_18, %c0_19] : memref<4x32x8xbf16, #tpu.memory_space<vmem>>, vector<4x32x8xbf16>
    %cst_20 = arith.constant dense<0.000000e+00> : vector<4x8x8xf32>
    %23 = tpu.matmul %13, %22, %cst_20 {dimension_numbers = #tpu.dot_dimension_numbers<[2], [1], [1], [2], [0, 0, 0, 1, 1, 2], [0], [0]>} : vector<4x8x32xbf16>, vector<4x32x8xbf16>, vector<4x8x8xf32> -> vector<4x8x8xf32>
    %c0_21 = arith.constant 0 : index
    %c0_22 = arith.constant 0 : index
    %c0_23 = arith.constant 0 : index
    %24 = vector.load %arg8[%c0_21, %c0_22, %c0_23] : memref<4x1x8xf32, #tpu.memory_space<vmem>>, vector<4x1x8xf32>
    %25 = vector.broadcast %24 : vector<4x1x8xf32> to vector<4x8x8xf32>
    %26 = arith.addf %23, %25 : vector<4x8x8xf32>
    %c0_24 = arith.constant 0 : index
    %c0_25 = arith.constant 0 : index
    %c0_26 = arith.constant 0 : index
    %27 = vector.load %arg9[%c0_24, %c0_25, %c0_26] : memref<4x32x8xbf16, #tpu.memory_space<vmem>>, vector<4x32x8xbf16>
    %cst_27 = arith.constant dense<0.000000e+00> : vector<4x8x8xf32>
    %28 = tpu.matmul %16, %27, %cst_27 {dimension_numbers = #tpu.dot_dimension_numbers<[2], [1], [1], [2], [0, 0, 0, 1, 1, 2], [0], [0]>} : vector<4x8x32xbf16>, vector<4x32x8xbf16>, vector<4x8x8xf32> -> vector<4x8x8xf32>
    %c0_28 = arith.constant 0 : index
    %c0_29 = arith.constant 0 : index
    %c0_30 = arith.constant 0 : index
    %29 = vector.load %arg10[%c0_28, %c0_29, %c0_30] : memref<4x1x8xf32, #tpu.memory_space<vmem>>, vector<4x1x8xf32>
    %30 = vector.broadcast %29 : vector<4x1x8xf32> to vector<4x8x8xf32>
    %31 = arith.addf %28, %30 : vector<4x8x8xf32>
    %32 = arith.truncf %21 : vector<4x8x8xf32> to vector<4x8x8xbf16>
    %33 = arith.truncf %26 : vector<4x8x8xf32> to vector<4x8x8xbf16>
    %cst_31 = arith.constant dense<0.000000e+00> : vector<4x8x8xf32>
    %34 = tpu.matmul %32, %33, %cst_31 {dimension_numbers = #tpu.dot_dimension_numbers<[2], [2], [1], [1], [0, 0, 0, 1, 1, 1], [0], [0]>} : vector<4x8x8xbf16>, vector<4x8x8xbf16>, vector<4x8x8xf32> -> vector<4x8x8xf32>
    %cst_32 = arith.constant 0.353553385 : f32
    %35 = vector.broadcast %cst_32 : f32 to vector<4x8x8xf32>
    %36 = arith.mulf %34, %35 : vector<4x8x8xf32>
    %cst_33 = arith.constant -1.000000e+09 : f32
    %37 = vector.broadcast %cst_33 : f32 to vector<1x8xf32>
    %38 = arith.mulf %7, %37 : vector<1x8xf32>
    %39 = vector.shape_cast %38 : vector<1x8xf32> to vector<1x1x8xf32>
    %40 = vector.broadcast %39 : vector<1x1x8xf32> to vector<4x8x8xf32>
    %41 = arith.addf %36, %40 : vector<4x8x8xf32>
    %cst_34 = arith.constant dense<0xFF800000> : vector<4x8xf32>
    %42 = vector.multi_reduction <maximumf>, %41, %cst_34 [2] : vector<4x8x8xf32> to vector<4x8xf32>
    %43 = vector.shape_cast %42 : vector<4x8xf32> to vector<4x8x1xf32>
    %44 = vector.broadcast %43 : vector<4x8x1xf32> to vector<4x8x8xf32>
    %45 = arith.subf %41, %44 : vector<4x8x8xf32>
    %46 = math.exp %45 : vector<4x8x8xf32>
    %cst_35 = arith.constant dense<0.000000e+00> : vector<4x8xf32>
    %47 = vector.multi_reduction <add>, %46, %cst_35 [2] : vector<4x8x8xf32> to vector<4x8xf32>
    %48 = vector.shape_cast %47 : vector<4x8xf32> to vector<4x8x1xf32>
    %49 = tpu.reciprocal %48 {approx = true} : vector<4x8x1xf32> -> vector<4x8x1xf32>
    %50 = vector.broadcast %49 : vector<4x8x1xf32> to vector<4x8x8xf32>
    %51 = arith.mulf %46, %50 : vector<4x8x8xf32>
    %52 = arith.truncf %51 : vector<4x8x8xf32> to vector<4x8x8xbf16>
    %53 = arith.truncf %31 : vector<4x8x8xf32> to vector<4x8x8xbf16>
    %cst_36 = arith.constant dense<0.000000e+00> : vector<4x8x8xf32>
    %54 = tpu.matmul %52, %53, %cst_36 {dimension_numbers = #tpu.dot_dimension_numbers<[2], [1], [1], [2], [0, 0, 0, 1, 1, 2], [0], [0]>} : vector<4x8x8xbf16>, vector<4x8x8xbf16>, vector<4x8x8xf32> -> vector<4x8x8xf32>
    %55 = arith.truncf %54 : vector<4x8x8xf32> to vector<4x8x8xbf16>
    %c0_37 = arith.constant 0 : index
    %c0_38 = arith.constant 0 : index
    %c0_39 = arith.constant 0 : index
    %56 = vector.load %arg11[%c0_37, %c0_38, %c0_39] : memref<4x8x32xbf16, #tpu.memory_space<vmem>>, vector<4x8x32xbf16>
    %cst_40 = arith.constant dense<0.000000e+00> : vector<4x8x32xf32>
    %57 = tpu.matmul %55, %56, %cst_40 {dimension_numbers = #tpu.dot_dimension_numbers<[2], [1], [1], [2], [0, 0, 0, 1, 1, 2], [0], [0]>} : vector<4x8x8xbf16>, vector<4x8x32xbf16>, vector<4x8x32xf32> -> vector<4x8x32xf32>
    %cst_41 = arith.constant dense<0.000000e+00> : vector<8x32xf32>
    %58 = vector.multi_reduction <add>, %57, %cst_41 [0] : vector<4x8x32xf32> to vector<8x32xf32>
    %c0_42 = arith.constant 0 : index
    %c0_43 = arith.constant 0 : index
    %59 = vector.load %arg12[%c0_42, %c0_43] : memref<1x32xf32, #tpu.memory_space<vmem>>, vector<1x32xf32>
    %60 = vector.broadcast %59 : vector<1x32xf32> to vector<8x32xf32>
    %61 = arith.addf %58, %60 : vector<8x32xf32>
    %c0_44 = arith.constant 0 : index
    %c0_45 = arith.constant 0 : index
    %c0_46 = arith.constant 0 : index
    %62 = vector.load %arg13[%c0_44, %c0_45, %c0_46] : memref<1x8x32xf32, #tpu.memory_space<vmem>>, vector<1x8x32xf32>
    %63 = vector.shape_cast %62 : vector<1x8x32xf32> to vector<8x32xf32>
    %64 = vector.shape_cast %61 : vector<8x32xf32> to vector<1x8x32xf32>
    tpu.vector_store %arg13[%c0_44, %c0_45, %c0_46], %64 {strides = array<i32>} : memref<1x8x32xf32, #tpu.memory_space<vmem>>, vector<1x8x32xf32>,
    return
  }
  func.func @transform_0(%arg0: i32) -> (i32, i32, i32) {
    %c0_i32 = arith.constant 0 : i32
    %c0_i32_0 = arith.constant 0 : i32
    %c0_i32_1 = arith.constant 0 : i32
    return %arg0, %c0_i32, %c0_i32_0 : i32, i32, i32
  }
  func.func @transform_1(%arg0: i32) -> (i32, i32, i32) {
    %c0_i32 = arith.constant 0 : i32
    %c0_i32_0 = arith.constant 0 : i32
    %c0_i32_1 = arith.constant 0 : i32
    return %arg0, %c0_i32, %c0_i32_0 : i32, i32, i32
  }
  func.func @transform_2(%arg0: i32) -> (i32, i32, i32) {
    %c0_i32 = arith.constant 0 : i32
    %c0_i32_0 = arith.constant 0 : i32
    %c0_i32_1 = arith.constant 0 : i32
    return %arg0, %c0_i32, %c0_i32_0 : i32, i32, i32
  }
  func.func @transform_3(%arg0: i32) -> (i32, i32, i32) {
    %c0_i32 = arith.constant 0 : i32
    %c0_i32_0 = arith.constant 0 : i32
    %c0_i32_1 = arith.constant 0 : i32
    return %arg0, %c0_i32, %c0_i32_0 : i32, i32, i32
  }
  func.func @transform_4(%arg0: i32) -> (i32, i32, i32) {
    %c0_i32 = arith.constant 0 : i32
    %c0_i32_0 = arith.constant 0 : i32
    %c0_i32_1 = arith.constant 0 : i32
    %c0_i32_2 = arith.constant 0 : i32
    return %c0_i32, %c0_i32_0, %c0_i32_1 : i32, i32, i32
  }
  func.func @transform_5(%arg0: i32) -> (i32, i32, i32) {
    %c0_i32 = arith.constant 0 : i32
    %c0_i32_0 = arith.constant 0 : i32
    %c0_i32_1 = arith.constant 0 : i32
    %c0_i32_2 = arith.constant 0 : i32
    return %c0_i32, %c0_i32_0, %c0_i32_1 : i32, i32, i32
  }
  func.func @transform_6(%arg0: i32) -> (i32, i32, i32) {
    %c0_i32 = arith.constant 0 : i32
    %c0_i32_0 = arith.constant 0 : i32
    %c0_i32_1 = arith.constant 0 : i32
    %c0_i32_2 = arith.constant 0 : i32
    return %c0_i32, %c0_i32_0, %c0_i32_1 : i32, i32, i32
  }
  func.func @transform_7(%arg0: i32) -> (i32, i32, i32) {
    %c0_i32 = arith.constant 0 : i32
    %c0_i32_0 = arith.constant 0 : i32
    %c0_i32_1 = arith.constant 0 : i32
    %c0_i32_2 = arith.constant 0 : i32
    return %c0_i32, %c0_i32_0, %c0_i32_1 : i32, i32, i32
  }
  func.func @transform_8(%arg0: i32) -> (i32, i32, i32) {
    %c0_i32 = arith.constant 0 : i32
    %c0_i32_0 = arith.constant 0 : i32
    %c0_i32_1 = arith.constant 0 : i32
    %c0_i32_2 = arith.constant 0 : i32
    return %c0_i32, %c0_i32_0, %c0_i32_1 : i32, i32, i32
  }
  func.func @transform_9(%arg0: i32) -> (i32, i32, i32) {
    %c0_i32 = arith.constant 0 : i32
    %c0_i32_0 = arith.constant 0 : i32
    %c0_i32_1 = arith.constant 0 : i32
    %c0_i32_2 = arith.constant 0 : i32
    return %c0_i32, %c0_i32_0, %c0_i32_1 : i32, i32, i32
  }
  func.func @transform_10(%arg0: i32) -> (i32, i32, i32) {
    %c0_i32 = arith.constant 0 : i32
    %c0_i32_0 = arith.constant 0 : i32
    %c0_i32_1 = arith.constant 0 : i32
    %c0_i32_2 = arith.constant 0 : i32
    return %c0_i32, %c0_i32_0, %c0_i32_1 : i32, i32, i32
  }
  func.func @transform_11(%arg0: i32) -> (i32, i32) {
    %c0_i32 = arith.constant 0 : i32
    %c0_i32_0 = arith.constant 0 : i32
    %c0_i32_1 = arith.constant 0 : i32
    return %c0_i32, %c0_i32_0 : i32, i32
  }
  func.func @transform_12(%arg0: i32) -> (i32, i32, i32) {
    %c0_i32 = arith.constant 0 : i32
    %c0_i32_0 = arith.constant 0 : i32
    %c0_i32_1 = arith.constant 0 : i32
    return %arg0, %c0_i32, %c0_i32_0 : i32, i32, i32
  }
}

</mosaic_0001>

<llo_original>
// kernel: tpu_custom_call.1
$region0: #{tpu_custom_call.1}
  #allocation0 [shape = 'u32[]', space=smem, size = 0x4, offset = 0x4, fixed_abs, tag = 'smem constant byte address 0x4 - core index']
  #allocation1 [shape = 'u32[72,128]{1,0:T(1,128)}', space=vmem, size = 0x9000, scoped, tag = 'internal scratch']
  %s0 = inlined_call_operand.vmem [shape: f32[2,8,32], index: 0, kind: input, shape index: {}]
  %s1 = inlined_call_operand.vmem [shape: f32[2,8,32], index: 1, kind: input, shape index: {}]
  %s2 = inlined_call_operand.vmem [shape: f32[2,8,32], index: 2, kind: input, shape index: {}]
  %s3 = inlined_call_operand.vmem [shape: f32[2,1,8], index: 3, kind: input, shape index: {}]
  %s4 = inlined_call_operand.vmem [shape: bf16[4,32,8], index: 4, kind: input, shape index: {}]
  %s5 = inlined_call_operand.vmem [shape: f32[4,1,8], index: 5, kind: input, shape index: {}]
  %s6 = inlined_call_operand.vmem [shape: bf16[4,32,8], index: 6, kind: input, shape index: {}]
  %s7 = inlined_call_operand.vmem [shape: f32[4,1,8], index: 7, kind: input, shape index: {}]
  %s8 = inlined_call_operand.vmem [shape: bf16[4,32,8], index: 8, kind: input, shape index: {}]
  %s9 = inlined_call_operand.vmem [shape: f32[4,1,8], index: 9, kind: input, shape index: {}]
  %s10 = inlined_call_operand.vmem [shape: bf16[4,8,32], index: 10, kind: input, shape index: {}]
  %s11 = inlined_call_operand.vmem [shape: f32[1,32], index: 11, kind: input, shape index: {}]
  %s12 = inlined_call_operand.hbm [shape: f32[2,8,32], index: 12, kind: output, shape index: {}]
  %s13 = sld [smem:[#allocation0]]
  $region81: #{tpu_custom_call.1} parent=0
    _
  %s15 = ssub.s32 1, %s13
  %s16 = scalar_select 0, %s15, %s13
  $region1: #{tpu_custom_call.1} parent=0
    #allocation2 [shape = 'u8[8192]{0}', space=vmem, size = 0x2000, scoped, tag = 'output window, operand 0']
    #allocation3 [shape = 's32[2]{0}', space=sflag, size = 0x8, scoped, tag = 'scoped memory for tpu_custom_call.1']
    %17 = vsyncpa [#allocation3], 0
    %s18 = scalar_lea.sflag [#allocation3], 1
    %19 = vsyncpa %s18, 0
    loop: start=0, step=1, limit=4
    $region2: #{tpu_custom_call.1} parent=1 // loop_pre_header
      _
    $region3: #{tpu_custom_call.1} parent=1 // loop_header
      %s21 = sphi 0, %s25
      %p22 = scmp.ge.s32.totalorder %s21, 4
      %s31 = sphi 0, %s33
      %s34 = sphi 0, %s31
      %s35 = sphi 0, %s34
      %s51 = sphi 0, %s35
      %s57 = sphi 0, %s59
      %s60 = sphi 0, %s57
      %s61 = sphi 0, %s60
      %s77 = sphi 0, %s61
      %s83 = sphi 0, %s85
      %s86 = sphi 0, %s83
      %s87 = sphi 0, %s86
      %s103 = sphi 0, %s87
      %s109 = sphi 0, %s111
      %s112 = sphi 0, %s109
      %s113 = sphi 0, %s112
      %s129 = sphi 0, %s113
      %s133 = sphi 0, %s133
      %s135 = sphi 0, %s133
      %s136 = sphi 0, %s135
      %s150 = sphi 0, %s136
      %s154 = sphi 0, %s154
      %s156 = sphi 0, %s154
      %s157 = sphi 0, %s156
      %s171 = sphi 0, %s157
      %s175 = sphi 0, %s175
      %s177 = sphi 0, %s175
      %s178 = sphi 0, %s177
      %s192 = sphi 0, %s178
      %s196 = sphi 0, %s196
      %s198 = sphi 0, %s196
      %s199 = sphi 0, %s198
      %s213 = sphi 0, %s199
      %s217 = sphi 0, %s217
      %s219 = sphi 0, %s217
      %s220 = sphi 0, %s219
      %s234 = sphi 0, %s220
      %s238 = sphi 0, %s238
      %s240 = sphi 0, %s238
      %s241 = sphi 0, %s240
      %s255 = sphi 0, %s241
      %s259 = sphi 0, %s259
      %s261 = sphi 0, %s259
      %s262 = sphi 0, %s261
      %s276 = sphi 0, %s262
      %s280 = sphi 0, %s280
      %s282 = sphi 0, %s280
      %s283 = sphi 0, %s282
      %s297 = sphi 0, %s283
      %s303 = sphi 0, %s305
      %s306 = sphi 0, %s303
      %s307 = sphi 0, %s306
      %s323 = sphi 0, %s307
    $region4: #{tpu_custom_call.1} parent=1 // loop_header_branch
      %24 = sbr.rel (%p22) target = $region8
    $region5: #{tpu_custom_call.1} parent=1 // loop_body
      %s26 = ssub.s32 %s21, 1
      %s27 = ssub.s32 %s21, 2
      %s28 = sadd.s32 %s21, 1
      %s29 = ssub.s32 %s21, %s28
      %p30 = scmp.eq.s32.totalorder %s29, 0
      %s32 = sadd.s32 %s31, 1
      %s33 = scalar_select %p30, %s31, %s32
      %p36 = pneg %p30
      %p37 = scmp.eq.s32.totalorder %s21, 1
      %p38 = por %p36, %p37
      %p39 = scmp.ne.s32.totalorder %s31, %s34
      %p40 = scmp.eq.s32.totalorder %s21, 0
      %p41 = por %p39, %p40
      %p42 = scmp.ne.s32.totalorder %s31, %s34
      %p43 = scmp.eq.s32.totalorder %s26, 1
      %p44 = por %p42, %p43
      %p45 = scmp.ne.s32.totalorder %s34, %s35
      %p46 = scmp.eq.s32.totalorder %s26, 0
      %p47 = por %p45, %p46
      %p48 = scmp.ne.s32.totalorder %s34, %s35
      %p49 = scmp.eq.s32.totalorder %s27, 1
      %p50 = por %p48, %p49
      %p52 = scmp.ne.s32.totalorder %s35, %s51
      %p53 = scmp.eq.s32.totalorder %s27, 0
      %p54 = por %p52, %p53
      %s55 = ssub.s32 %s21, %s28
      %p56 = scmp.eq.s32.totalorder %s55, 0
      %s58 = sadd.s32 %s57, 1
      %s59 = scalar_select %p56, %s57, %s58
      %p62 = pneg %p56
      %p63 = scmp.eq.s32.totalorder %s21, 1
      %p64 = por %p62, %p63
      %p65 = scmp.ne.s32.totalorder %s57, %s60
      %p66 = scmp.eq.s32.totalorder %s21, 0
      %p67 = por %p65, %p66
      %p68 = scmp.ne.s32.totalorder %s57, %s60
      %p69 = scmp.eq.s32.totalorder %s26, 1
      %p70 = por %p68, %p69
      %p71 = scmp.ne.s32.totalorder %s60, %s61
      %p72 = scmp.eq.s32.totalorder %s26, 0
      %p73 = por %p71, %p72
      %p74 = scmp.ne.s32.totalorder %s60, %s61
      %p75 = scmp.eq.s32.totalorder %s27, 1
      %p76 = por %p74, %p75
      %p78 = scmp.ne.s32.totalorder %s61, %s77
      %p79 = scmp.eq.s32.totalorder %s27, 0
      %p80 = por %p78, %p79
      %s81 = ssub.s32 %s21, %s28
      %p82 = scmp.eq.s32.totalorder %s81, 0
      %s84 = sadd.s32 %s83, 1
      %s85 = scalar_select %p82, %s83, %s84
      %p88 = pneg %p82
      %p89 = scmp.eq.s32.totalorder %s21, 1
      %p90 = por %p88, %p89
      %p91 = scmp.ne.s32.totalorder %s83, %s86
      %p92 = scmp.eq.s32.totalorder %s21, 0
      %p93 = por %p91, %p92
      %p94 = scmp.ne.s32.totalorder %s83, %s86
      %p95 = scmp.eq.s32.totalorder %s26, 1
      %p96 = por %p94, %p95
      %p97 = scmp.ne.s32.totalorder %s86, %s87
      %p98 = scmp.eq.s32.totalorder %s26, 0
      %p99 = por %p97, %p98
      %p100 = scmp.ne.s32.totalorder %s86, %s87
      %p101 = scmp.eq.s32.totalorder %s27, 1
      %p102 = por %p100, %p101
      %p104 = scmp.ne.s32.totalorder %s87, %s103
      %p105 = scmp.eq.s32.totalorder %s27, 0
      %p106 = por %p104, %p105
      %s107 = ssub.s32 %s21, %s28
      %p108 = scmp.eq.s32.totalorder %s107, 0
      %s110 = sadd.s32 %s109, 1
      %s111 = scalar_select %p108, %s109, %s110
      %p114 = pneg %p108
      %p115 = scmp.eq.s32.totalorder %s21, 1
      %p116 = por %p114, %p115
      %p117 = scmp.ne.s32.totalorder %s109, %s112
      %p118 = scmp.eq.s32.totalorder %s21, 0
      %p119 = por %p117, %p118
      %p120 = scmp.ne.s32.totalorder %s109, %s112
      %p121 = scmp.eq.s32.totalorder %s26, 1
      %p122 = por %p120, %p121
      %p123 = scmp.ne.s32.totalorder %s112, %s113
      %p124 = scmp.eq.s32.totalorder %s26, 0
      %p125 = por %p123, %p124
      %p126 = scmp.ne.s32.totalorder %s112, %s113
      %p127 = scmp.eq.s32.totalorder %s27, 1
      %p128 = por %p126, %p127
      %p130 = scmp.ne.s32.totalorder %s113, %s129
      %p131 = scmp.eq.s32.totalorder %s27, 0
      %p132 = por %p130, %p131
      %s134 = sadd.s32 %s133, 1
      %p137 = scmp.eq.s32.totalorder %s21, 1
      %p138 = scmp.ne.s32.totalorder %s133, %s135
      %p139 = scmp.eq.s32.totalorder %s21, 0
      %p140 = por %p138, %p139
      %p141 = scmp.ne.s32.totalorder %s133, %s135
      %p142 = scmp.eq.s32.totalorder %s26, 1
      %p143 = por %p141, %p142
      %p144 = scmp.ne.s32.totalorder %s135, %s136
      %p145 = scmp.eq.s32.totalorder %s26, 0
      %p146 = por %p144, %p145
      %p147 = scmp.ne.s32.totalorder %s135, %s136
      %p148 = scmp.eq.s32.totalorder %s27, 1
      %p149 = por %p147, %p148
      %p151 = scmp.ne.s32.totalorder %s136, %s150
      %p152 = scmp.eq.s32.totalorder %s27, 0
      %p153 = por %p151, %p152
      %s155 = sadd.s32 %s154, 1
      %p158 = scmp.eq.s32.totalorder %s21, 1
      %p159 = scmp.ne.s32.totalorder %s154, %s156
      %p160 = scmp.eq.s32.totalorder %s21, 0
      %p161 = por %p159, %p160
      %p162 = scmp.ne.s32.totalorder %s154, %s156
      %p163 = scmp.eq.s32.totalorder %s26, 1
      %p164 = por %p162, %p163
      %p165 = scmp.ne.s32.totalorder %s156, %s157
      %p166 = scmp.eq.s32.totalorder %s26, 0
      %p167 = por %p165, %p166
      %p168 = scmp.ne.s32.totalorder %s156, %s157
      %p169 = scmp.eq.s32.totalorder %s27, 1
      %p170 = por %p168, %p169
      %p172 = scmp.ne.s32.totalorder %s157, %s171
      %p173 = scmp.eq.s32.totalorder %s27, 0
      %p174 = por %p172, %p173
      %s176 = sadd.s32 %s175, 1
      %p179 = scmp.eq.s32.totalorder %s21, 1
      %p180 = scmp.ne.s32.totalorder %s175, %s177
      %p181 = scmp.eq.s32.totalorder %s21, 0
      %p182 = por %p180, %p181
      %p183 = scmp.ne.s32.totalorder %s175, %s177
      %p184 = scmp.eq.s32.totalorder %s26, 1
      %p185 = por %p183, %p184
      %p186 = scmp.ne.s32.totalorder %s177, %s178
      %p187 = scmp.eq.s32.totalorder %s26, 0
      %p188 = por %p186, %p187
      %p189 = scmp.ne.s32.totalorder %s177, %s178
      %p190 = scmp.eq.s32.totalorder %s27, 1
      %p191 = por %p189, %p190
      %p193 = scmp.ne.s32.totalorder %s178, %s192
      %p194 = scmp.eq.s32.totalorder %s27, 0
      %p195 = por %p193, %p194
      %s197 = sadd.s32 %s196, 1
      %p200 = scmp.eq.s32.totalorder %s21, 1
      %p201 = scmp.ne.s32.totalorder %s196, %s198
      %p202 = scmp.eq.s32.totalorder %s21, 0
      %p203 = por %p201, %p202
      %p204 = scmp.ne.s32.totalorder %s196, %s198
      %p205 = scmp.eq.s32.totalorder %s26, 1
      %p206 = por %p204, %p205
      %p207 = scmp.ne.s32.totalorder %s198, %s199
      %p208 = scmp.eq.s32.totalorder %s26, 0
      %p209 = por %p207, %p208
      %p210 = scmp.ne.s32.totalorder %s198, %s199
      %p211 = scmp.eq.s32.totalorder %s27, 1
      %p212 = por %p210, %p211
      %p214 = scmp.ne.s32.totalorder %s199, %s213
      %p215 = scmp.eq.s32.totalorder %s27, 0
      %p216 = por %p214, %p215
      %s218 = sadd.s32 %s217, 1
      %p221 = scmp.eq.s32.totalorder %s21, 1
      %p222 = scmp.ne.s32.totalorder %s217, %s219
      %p223 = scmp.eq.s32.totalorder %s21, 0
      %p224 = por %p222, %p223
      %p225 = scmp.ne.s32.totalorder %s217, %s219
      %p226 = scmp.eq.s32.totalorder %s26, 1
      %p227 = por %p225, %p226
      %p228 = scmp.ne.s32.totalorder %s219, %s220
      %p229 = scmp.eq.s32.totalorder %s26, 0
      %p230 = por %p228, %p229
      %p231 = scmp.ne.s32.totalorder %s219, %s220
      %p232 = scmp.eq.s32.totalorder %s27, 1
      %p233 = por %p231, %p232
      %p235 = scmp.ne.s32.totalorder %s220, %s234
      %p236 = scmp.eq.s32.totalorder %s27, 0
      %p237 = por %p235, %p236
      %s239 = sadd.s32 %s238, 1
      %p242 = scmp.eq.s32.totalorder %s21, 1
      %p243 = scmp.ne.s32.totalorder %s238, %s240
      %p244 = scmp.eq.s32.totalorder %s21, 0
      %p245 = por %p243, %p244
      %p246 = scmp.ne.s32.totalorder %s238, %s240
      %p247 = scmp.eq.s32.totalorder %s26, 1
      %p248 = por %p246, %p247
      %p249 = scmp.ne.s32.totalorder %s240, %s241
      %p250 = scmp.eq.s32.totalorder %s26, 0
      %p251 = por %p249, %p250
      %p252 = scmp.ne.s32.totalorder %s240, %s241
      %p253 = scmp.eq.s32.totalorder %s27, 1
      %p254 = por %p252, %p253
      %p256 = scmp.ne.s32.totalorder %s241, %s255
      %p257 = scmp.eq.s32.totalorder %s27, 0
      %p258 = por %p256, %p257
      %s260 = sadd.s32 %s259, 1
      %p263 = scmp.eq.s32.totalorder %s21, 1
      %p264 = scmp.ne.s32.totalorder %s259, %s261
      %p265 = scmp.eq.s32.totalorder %s21, 0
      %p266 = por %p264, %p265
      %p267 = scmp.ne.s32.totalorder %s259, %s261
      %p268 = scmp.eq.s32.totalorder %s26, 1
      %p269 = por %p267, %p268
      %p270 = scmp.ne.s32.totalorder %s261, %s262
      %p271 = scmp.eq.s32.totalorder %s26, 0
      %p272 = por %p270, %p271
      %p273 = scmp.ne.s32.totalorder %s261, %s262
      %p274 = scmp.eq.s32.totalorder %s27, 1
      %p275 = por %p273, %p274
      %p277 = scmp.ne.s32.totalorder %s262, %s276
      %p278 = scmp.eq.s32.totalorder %s27, 0
      %p279 = por %p277, %p278
      %s281 = sadd.s32 %s280, 1
      %p284 = scmp.eq.s32.totalorder %s21, 1
      %p285 = scmp.ne.s32.totalorder %s280, %s282
      %p286 = scmp.eq.s32.totalorder %s21, 0
      %p287 = por %p285, %p286
      %p288 = scmp.ne.s32.totalorder %s280, %s282
      %p289 = scmp.eq.s32.totalorder %s26, 1
      %p290 = por %p288, %p289
      %p291 = scmp.ne.s32.totalorder %s282, %s283
      %p292 = scmp.eq.s32.totalorder %s26, 0
      %p293 = por %p291, %p292
      %p294 = scmp.ne.s32.totalorder %s282, %s283
      %p295 = scmp.eq.s32.totalorder %s27, 1
      %p296 = por %p294, %p295
      %p298 = scmp.ne.s32.totalorder %s283, %s297
      %p299 = scmp.eq.s32.totalorder %s27, 0
      %p300 = por %p298, %p299
      %s301 = ssub.s32 %s21, %s28
      %p302 = scmp.eq.s32.totalorder %s301, 0
      %s304 = sadd.s32 %s303, 1
      %s305 = scalar_select %p302, %s303, %s304
      %p308 = pneg %p302
      %p309 = scmp.eq.s32.totalorder %s21, 1
      %p310 = por %p308, %p309
      %p311 = scmp.ne.s32.totalorder %s303, %s306
      %p312 = scmp.eq.s32.totalorder %s21, 0
      %p313 = por %p311, %p312
      %p314 = scmp.ne.s32.totalorder %s303, %s306
      %p315 = scmp.eq.s32.totalorder %s26, 1
      %p316 = por %p314, %p315
      %p317 = scmp.ne.s32.totalorder %s306, %s307
      %p318 = scmp.eq.s32.totalorder %s26, 0
      %p319 = por %p317, %p318
      %p320 = scmp.ne.s32.totalorder %s306, %s307
      %p321 = scmp.eq.s32.totalorder %s27, 1
      %p322 = por %p320, %p321
      %p324 = scmp.ne.s32.totalorder %s307, %s323
      %p325 = scmp.eq.s32.totalorder %s27, 0
      %p326 = por %p324, %p325
      %p327 = scmp.le.s32.totalorder 1, %s21
      %p328 = scmp.lt.s32.totalorder %s21, 3
      %p329 = pnand %p327, %p328
      %p330 = pneg %p329
      // Predicated region
      $region9: #{tpu_custom_call.1} parent=5 // pred_check
        _
      $region10: #{tpu_custom_call.1} parent=5 // pred_check_branch
        %332 = sbr.rel (%p329) target = $region12
      $region11: #{tpu_custom_call.1} parent=5 // pred_region
        %s333 = ssub.s32 %s21, 1
        // Predicated region
        $region13: #{tpu_custom_call.1} parent=11 // pred_check
          %p334 = pneg %p146
        $region14: #{tpu_custom_call.1} parent=11 // pred_check_branch
          %336 = sbr.rel (%p334) target = $region16
        $region15: #{tpu_custom_call.1} parent=11 // pred_region
          _
        $region16: #{tpu_custom_call.1} parent=11 // pred_fallthru
          _
        // Predicated region
        $region17: #{tpu_custom_call.1} parent=11 // pred_check
          %p337 = pneg %p167
        $region18: #{tpu_custom_call.1} parent=11 // pred_check_branch
          %339 = sbr.rel (%p337) target = $region20
        $region19: #{tpu_custom_call.1} parent=11 // pred_region
          _
        $region20: #{tpu_custom_call.1} parent=11 // pred_fallthru
          _
        // Predicated region
        $region21: #{tpu_custom_call.1} parent=11 // pred_check
          %p340 = pneg %p188
        $region22: #{tpu_custom_call.1} parent=11 // pred_check_branch
          %342 = sbr.rel (%p340) target = $region24
        $region23: #{tpu_custom_call.1} parent=11 // pred_region
          _
        $region24: #{tpu_custom_call.1} parent=11 // pred_fallthru
          _
        // Predicated region
        $region25: #{tpu_custom_call.1} parent=11 // pred_check
          %p343 = pneg %p209
        $region26: #{tpu_custom_call.1} parent=11 // pred_check_branch
          %345 = sbr.rel (%p343) target = $region28
        $region27: #{tpu_custom_call.1} parent=11 // pred_region
          _
        $region28: #{tpu_custom_call.1} parent=11 // pred_fallthru
          _
        // Predicated region
        $region29: #{tpu_custom_call.1} parent=11 // pred_check
          %p346 = pneg %p230
        $region30: #{tpu_custom_call.1} parent=11 // pred_check_branch
          %348 = sbr.rel (%p346) target = $region32
        $region31: #{tpu_custom_call.1} parent=11 // pred_region
          _
        $region32: #{tpu_custom_call.1} parent=11 // pred_fallthru
          _
        // Predicated region
        $region33: #{tpu_custom_call.1} parent=11 // pred_check
          %p349 = pneg %p251
        $region34: #{tpu_custom_call.1} parent=11 // pred_check_branch
          %351 = sbr.rel (%p349) target = $region36
        $region35: #{tpu_custom_call.1} parent=11 // pred_region
          _
        $region36: #{tpu_custom_call.1} parent=11 // pred_fallthru
          _
        // Predicated region
        $region37: #{tpu_custom_call.1} parent=11 // pred_check
          %p352 = pneg %p272
        $region38: #{tpu_custom_call.1} parent=11 // pred_check_branch
          %354 = sbr.rel (%p352) target = $region40
        $region39: #{tpu_custom_call.1} parent=11 // pred_region
          _
        $region40: #{tpu_custom_call.1} parent=11 // pred_fallthru
          _
        // Predicated region
        $region41: #{tpu_custom_call.1} parent=11 // pred_check
          %p355 = pneg %p293
        $region42: #{tpu_custom_call.1} parent=11 // pred_check_branch
          %357 = sbr.rel (%p355) target = $region44
        $region43: #{tpu_custom_call.1} parent=11 // pred_region
          _
        $region44: #{tpu_custom_call.1} parent=11 // pred_fallthru
          _
      $region12: #{tpu_custom_call.1} parent=5 // pred_fallthru
        _
      %p358 = scmp.lt.s32.totalorder %s21, 2
      // Predicated region
      $region45: #{tpu_custom_call.1} parent=5 // pred_check
        %p359 = pneg %p358
      $region46: #{tpu_custom_call.1} parent=5 // pred_check_branch
        %361 = sbr.rel (%p359) target = $region48
      $region47: #{tpu_custom_call.1} parent=5 // pred_region
        // Predicated region
        $region49: #{tpu_custom_call.1} parent=47 // pred_check
          %p362 = pneg %p41
        $region50: #{tpu_custom_call.1} parent=47 // pred_check_branch
          %364 = sbr.rel (%p362) target = $region52
        $region51: #{tpu_custom_call.1} parent=47 // pred_region
          %p365 = scmp.lt.s32.totalorder %s21, 1
          %s366 = scalar_select %p365, %s21, 1
          %s367 = smul.addr %s366, 8
          %s368 = scalar_lea.vmem %s0, %s367
        $region52: #{tpu_custom_call.1} parent=47 // pred_fallthru
          _
        // Predicated region
        $region53: #{tpu_custom_call.1} parent=47 // pred_check
          %p369 = pneg %p67
        $region54: #{tpu_custom_call.1} parent=47 // pred_check_branch
          %371 = sbr.rel (%p369) target = $region56
        $region55: #{tpu_custom_call.1} parent=47 // pred_region
          %p372 = scmp.lt.s32.totalorder %s21, 1
          %s373 = scalar_select %p372, %s21, 1
          %s374 = smul.addr %s373, 8
          %s375 = scalar_lea.vmem %s1, %s374
        $region56: #{tpu_custom_call.1} parent=47 // pred_fallthru
          _
        // Predicated region
        $region57: #{tpu_custom_call.1} parent=47 // pred_check
          %p376 = pneg %p93
        $region58: #{tpu_custom_call.1} parent=47 // pred_check_branch
          %378 = sbr.rel (%p376) target = $region60
        $region59: #{tpu_custom_call.1} parent=47 // pred_region
          %p379 = scmp.lt.s32.totalorder %s21, 1
          %s380 = scalar_select %p379, %s21, 1
          %s381 = smul.addr %s380, 8
          %s382 = scalar_lea.vmem %s2, %s381
        $region60: #{tpu_custom_call.1} parent=47 // pred_fallthru
          _
        // Predicated region
        $region61: #{tpu_custom_call.1} parent=47 // pred_check
          %p383 = pneg %p119
        $region62: #{tpu_custom_call.1} parent=47 // pred_check_branch
          %385 = sbr.rel (%p383) target = $region64
        $region63: #{tpu_custom_call.1} parent=47 // pred_region
          %p386 = scmp.lt.s32.totalorder %s21, 1
          %s387 = scalar_select %p386, %s21, 1
          %s388 = scalar_lea.vmem %s3, %s387
        $region64: #{tpu_custom_call.1} parent=47 // pred_fallthru
          _
      $region48: #{tpu_custom_call.1} parent=5 // pred_fallthru
        _
      %p389 = scmp.le.s32.totalorder 1, %s21
      %p390 = scmp.lt.s32.totalorder %s21, 3
      %p391 = pnand %p389, %p390
      %p392 = pneg %p391
      // Predicated region
      $region65: #{tpu_custom_call.1} parent=5 // pred_check
        _
      $region66: #{tpu_custom_call.1} parent=5 // pred_check_branch
        %394 = sbr.rel (%p391) target = $region68
      $region67: #{tpu_custom_call.1} parent=5 // pred_region
        %s395 = ssub.s32 %s21, 1
        %p396 = scmp.lt.s32.totalorder %s26, 1
        %s397 = scalar_select %p396, %s26, 1
        %s398 = smul.addr %s397, 8
        %s399 = scalar_lea.vmem %s0, %s398
        %p400 = pneg %p47
        %p401 = pneg %p44
        %p402 = scmp.lt.s32.totalorder %s26, 1
        %s403 = scalar_select %p402, %s26, 1
        %s404 = smul.addr %s403, 8
        %s405 = scalar_lea.vmem %s1, %s404
        %p406 = pneg %p73
        %p407 = pneg %p70
        %p408 = scmp.lt.s32.totalorder %s26, 1
        %s409 = scalar_select %p408, %s26, 1
        %s410 = smul.addr %s409, 8
        %s411 = scalar_lea.vmem %s2, %s410
        %p412 = pneg %p99
        %p413 = pneg %p96
        %p414 = scmp.lt.s32.totalorder %s26, 1
        %s415 = scalar_select %p414, %s26, 1
        %s416 = scalar_lea.vmem %s3, %s415
        %p417 = pneg %p125
        %p418 = pneg %p122
        %p419 = pneg %p146
        %p420 = pneg %p143
        %p421 = pneg %p167
        %p422 = pneg %p164
        %p423 = pneg %p188
        %p424 = pneg %p185
        %p425 = pneg %p209
        %p426 = pneg %p206
        %p427 = pneg %p230
        %p428 = pneg %p227
        %p429 = pneg %p251
        %p430 = pneg %p248
        %p431 = pneg %p272
        %p432 = pneg %p269
        %p433 = pneg %p293
        %p434 = pneg %p290
        %p435 = pneg %p319
        %p436 = pneg %p316
        %s437 = sand.u32 %s306, 1
        %s438 = scalar_lea.sflag [#allocation3], %s437
        %s439 = sand.u32 %s306, 1
        %s440 = smul.addr %s439, 8
        %s441 = scalar_lea.vmem [#allocation2], %s440
        %p442 = scmp.lt.s32.totalorder %s26, 1
        %s443 = scalar_select %p442, %s26, 1
        %s444 = smul.addr %s443, 8
        %s445 = scalar_lea.vmem %s0, %s444
        %p446 = scmp.lt.s32.totalorder %s26, 1
        %s447 = scalar_select %p446, %s26, 1
        %s448 = smul.addr %s447, 8
        %s449 = scalar_lea.vmem %s1, %s448
        %p450 = scmp.lt.s32.totalorder %s26, 1
        %s451 = scalar_select %p450, %s26, 1
        %s452 = smul.addr %s451, 8
        %s453 = scalar_lea.vmem %s2, %s452
        %p454 = scmp.lt.s32.totalorder %s26, 1
        %s455 = scalar_select %p454, %s26, 1
        %s456 = scalar_lea.vmem %s3, %s455
        %v458 = vld [vmem:[%s445] sm:$0xff]
        %v459 = vld [vmem:[%s449] sm:$0xff]
        %v460 = vld [vmem:[%s453] sm:$0xff]
        %v461 = vld [vmem:[%s456] sm:$0x1]
        %v462 = vpack.c.bf16 %v458, %v458
        %v463 = vpack.c.bf16 %v459, %v459
        %v464 = vpack.c.bf16 %v460, %v460
        %v465 = vld [vmem:[%s4] sm:$0xf]
        %v466 = vld [vmem:[%s4 + $0x4] sm:$0xf]
        %v467 = vld [vmem:[%s4 + $0x8] sm:$0xf]
        %v468 = vld [vmem:[%s4 + $0xc] sm:$0xf]
        %v469 = vld [vmem:[%s4 + $0x10] sm:$0xf]
        %v470 = vld [vmem:[%s4 + $0x14] sm:$0xf]
        %v471 = vld [vmem:[%s4 + $0x18] sm:$0xf]
        %v472 = vld [vmem:[%s4 + $0x1c] sm:$0xf]
        %v473 = vld [vmem:[%s4 + $0x20] sm:$0xf]
        %v474 = vld [vmem:[%s4 + $0x24] sm:$0xf]
        %v475 = vld [vmem:[%s4 + $0x28] sm:$0xf]
        %v476 = vld [vmem:[%s4 + $0x2c] sm:$0xf]
        %v477 = vld [vmem:[%s4 + $0x30] sm:$0xf]
        %v478 = vld [vmem:[%s4 + $0x34] sm:$0xf]
        %v479 = vld [vmem:[%s4 + $0x38] sm:$0xf]
        %v480 = vld [vmem:[%s4 + $0x3c] sm:$0xf]
        %v481 = vld [vmem:[%s5] sm:$0x1]
        %v482 = vld [vmem:[%s5 + $0x1] sm:$0x1]
        %v483 = vld [vmem:[%s5 + $0x2] sm:$0x1]
        %v484 = vld [vmem:[%s5 + $0x3] sm:$0x1]
        %v489 = vperm.slane %v481, 0
        %v490 = vperm.slane %v482, 0
        %v491 = vperm.slane %v483, 0
        %v492 = vperm.slane %v484, 0
        %v501 = vunpack.c.l.b16 %v465
        %v502 = vunpack.c.l.b16 %v466
        %v503 = vunpack.c.l.b16 %v467
        %v504 = vunpack.c.l.b16 %v468
        %v505 = vpack.c.b16 %v502, %v501
        %v506 = vpack.c.b16 %v504, %v503
        %vm509 = vcmask 261120
        %v511 = vsel %vm509, %v462, 0
        %513 = vmatpush.bf16.msra.mxu0 0
        %514 = vmatpush.bf16.msra.mxu0 0
        %515 = vmatpush.bf16.msra.mxu0 0
        %516 = vmatpush.bf16.msra.mxu0 0
        %517 = vmatpush.bf16.msra.mxu0 0
        %518 = vmatpush.bf16.msra.mxu0 0
        %519 = vmatpush.bf16.msra.mxu0 %v506
        %520 = vmatpush.bf16.msra.mxu0 %v505
        %521 = vmatmul.bf16.gmra.mxu0 %v511
        %v522 = vpop.f32.mrf.mxu0
        %v523 = vadd.f32 %v489, %v522
        %v524 = vpop.f32.mrf.mxu0
        %525 = vdwg.mxu0
        %v530 = vunpack.c.l.b16 %v469
        %v531 = vunpack.c.l.b16 %v470
        %v532 = vunpack.c.l.b16 %v471
        %v533 = vunpack.c.l.b16 %v472
        %v534 = vpack.c.b16 %v531, %v530
        %v535 = vpack.c.b16 %v533, %v532
        %538 = vmatpush.bf16.msra.mxu0 0
        %539 = vmatpush.bf16.msra.mxu0 0
        %540 = vmatpush.bf16.msra.mxu0 0
        %541 = vmatpush.bf16.msra.mxu0 0
        %542 = vmatpush.bf16.msra.mxu0 0
        %543 = vmatpush.bf16.msra.mxu0 0
        %544 = vmatpush.bf16.msra.mxu0 %v535
        %545 = vmatpush.bf16.msra.mxu0 %v534
        %546 = vmatmul.bf16.gmra.mxu0 %v511
        %v547 = vpop.f32.mrf.mxu0
        %v548 = vadd.f32 %v490, %v547
        %v549 = vpop.f32.mrf.mxu0
        %550 = vdwg.mxu0
        %v555 = vunpack.c.l.b16 %v473
        %v556 = vunpack.c.l.b16 %v474
        %v557 = vunpack.c.l.b16 %v475
        %v558 = vunpack.c.l.b16 %v476
        %v559 = vpack.c.b16 %v556, %v555
        %v560 = vpack.c.b16 %v558, %v557
        %563 = vmatpush.bf16.msra.mxu0 0
        %564 = vmatpush.bf16.msra.mxu0 0
        %565 = vmatpush.bf16.msra.mxu0 0
        %566 = vmatpush.bf16.msra.mxu0 0
        %567 = vmatpush.bf16.msra.mxu0 0
        %568 = vmatpush.bf16.msra.mxu0 0
        %569 = vmatpush.bf16.msra.mxu0 %v560
        %570 = vmatpush.bf16.msra.mxu0 %v559
        %571 = vmatmul.bf16.gmra.mxu0 %v511
        %v572 = vpop.f32.mrf.mxu0
        %v573 = vadd.f32 %v491, %v572
        %v574 = vpop.f32.mrf.mxu0
        %575 = vdwg.mxu0
        %v580 = vunpack.c.l.b16 %v477
        %v581 = vunpack.c.l.b16 %v478
        %v582 = vunpack.c.l.b16 %v479
        %v583 = vunpack.c.l.b16 %v480
        %v584 = vpack.c.b16 %v581, %v580
        %v585 = vpack.c.b16 %v583, %v582
        %588 = vmatpush.bf16.msra.mxu0 0
        %589 = vmatpush.bf16.msra.mxu0 0
        %590 = vmatpush.bf16.msra.mxu0 0
        %591 = vmatpush.bf16.msra.mxu0 0
        %592 = vmatpush.bf16.msra.mxu0 0
        %593 = vmatpush.bf16.msra.mxu0 0
        %594 = vmatpush.bf16.msra.mxu0 %v585
        %595 = vmatpush.bf16.msra.mxu0 %v584
        %596 = vmatmul.bf16.gmra.mxu0 %v511
        %v597 = vpop.f32.mrf.mxu0
        %v598 = vadd.f32 %v492, %v597
        %v599 = vpop.f32.mrf.mxu0
        %600 = vdwg.mxu0
        %v601 = vld [vmem:[%s6] sm:$0xf]
        %v602 = vld [vmem:[%s6 + $0x4] sm:$0xf]
        %v603 = vld [vmem:[%s6 + $0x8] sm:$0xf]
        %v604 = vld [vmem:[%s6 + $0xc] sm:$0xf]
        %v605 = vld [vmem:[%s6 + $0x10] sm:$0xf]
        %v606 = vld [vmem:[%s6 + $0x14] sm:$0xf]
        %v607 = vld [vmem:[%s6 + $0x18] sm:$0xf]
        %v608 = vld [vmem:[%s6 + $0x1c] sm:$0xf]
        %v609 = vld [vmem:[%s6 + $0x20] sm:$0xf]
        %v610 = vld [vmem:[%s6 + $0x24] sm:$0xf]
        %v611 = vld [vmem:[%s6 + $0x28] sm:$0xf]
        %v612 = vld [vmem:[%s6 + $0x2c] sm:$0xf]
        %v613 = vld [vmem:[%s6 + $0x30] sm:$0xf]
        %v614 = vld [vmem:[%s6 + $0x34] sm:$0xf]
        %v615 = vld [vmem:[%s6 + $0x38] sm:$0xf]
        %v616 = vld [vmem:[%s6 + $0x3c] sm:$0xf]
        %v617 = vld [vmem:[%s7] sm:$0x1]
        %v618 = vld [vmem:[%s7 + $0x1] sm:$0x1]
        %v619 = vld [vmem:[%s7 + $0x2] sm:$0x1]
        %v620 = vld [vmem:[%s7 + $0x3] sm:$0x1]
        %v625 = vperm.slane %v617, 0
        %v626 = vperm.slane %v618, 0
        %v627 = vperm.slane %v619, 0
        %v628 = vperm.slane %v620, 0
        %v637 = vunpack.c.l.b16 %v601
        %v638 = vunpack.c.l.b16 %v602
        %v639 = vunpack.c.l.b16 %v603
        %v640 = vunpack.c.l.b16 %v604
        %v641 = vpack.c.b16 %v638, %v637
        %v642 = vpack.c.b16 %v640, %v639
        %v646 = vsel %vm509, %v463, 0
        %648 = vmatpush.bf16.msra.mxu0 0
        %649 = vmatpush.bf16.msra.mxu0 0
        %650 = vmatpush.bf16.msra.mxu0 0
        %651 = vmatpush.bf16.msra.mxu0 0
        %652 = vmatpush.bf16.msra.mxu0 0
        %653 = vmatpush.bf16.msra.mxu0 0
        %654 = vmatpush.bf16.msra.mxu0 %v642
        %655 = vmatpush.bf16.msra.mxu0 %v641
        %656 = vmatmul.bf16.gmra.mxu0 %v646
        %v657 = vpop.f32.mrf.mxu0
        %v658 = vadd.f32 %v625, %v657
        %v659 = vpop.f32.mrf.mxu0
        %660 = vdwg.mxu0
        %v665 = vunpack.c.l.b16 %v605
        %v666 = vunpack.c.l.b16 %v606
        %v667 = vunpack.c.l.b16 %v607
        %v668 = vunpack.c.l.b16 %v608
        %v669 = vpack.c.b16 %v666, %v665
        %v670 = vpack.c.b16 %v668, %v667
        %673 = vmatpush.bf16.msra.mxu0 0
        %674 = vmatpush.bf16.msra.mxu0 0
        %675 = vmatpush.bf16.msra.mxu0 0
        %676 = vmatpush.bf16.msra.mxu0 0
        %677 = vmatpush.bf16.msra.mxu0 0
        %678 = vmatpush.bf16.msra.mxu0 0
        %679 = vmatpush.bf16.msra.mxu0 %v670
        %680 = vmatpush.bf16.msra.mxu0 %v669
        %681 = vmatmul.bf16.gmra.mxu0 %v646
        %v682 = vpop.f32.mrf.mxu0
        %v683 = vadd.f32 %v626, %v682
        %v684 = vpop.f32.mrf.mxu0
        %685 = vdwg.mxu0
        %v690 = vunpack.c.l.b16 %v609
        %v691 = vunpack.c.l.b16 %v610
        %v692 = vunpack.c.l.b16 %v611
        %v693 = vunpack.c.l.b16 %v612
        %v694 = vpack.c.b16 %v691, %v690
        %v695 = vpack.c.b16 %v693, %v692
        %698 = vmatpush.bf16.msra.mxu0 0
        %699 = vmatpush.bf16.msra.mxu0 0
        %700 = vmatpush.bf16.msra.mxu0 0
        %701 = vmatpush.bf16.msra.mxu0 0
        %702 = vmatpush.bf16.msra.mxu0 0
        %703 = vmatpush.bf16.msra.mxu0 0
        %704 = vmatpush.bf16.msra.mxu0 %v695
        %705 = vmatpush.bf16.msra.mxu0 %v694
        %706 = vmatmul.bf16.gmra.mxu0 %v646
        %v707 = vpop.f32.mrf.mxu0
        %v708 = vadd.f32 %v627, %v707
        %v709 = vpop.f32.mrf.mxu0
        %710 = vdwg.mxu0
        %v715 = vunpack.c.l.b16 %v613
        %v716 = vunpack.c.l.b16 %v614
        %v717 = vunpack.c.l.b16 %v615
        %v718 = vunpack.c.l.b16 %v616
        %v719 = vpack.c.b16 %v716, %v715
        %v720 = vpack.c.b16 %v718, %v717
        %723 = vmatpush.bf16.msra.mxu0 0
        %724 = vmatpush.bf16.msra.mxu0 0
        %725 = vmatpush.bf16.msra.mxu0 0
        %726 = vmatpush.bf16.msra.mxu0 0
        %727 = vmatpush.bf16.msra.mxu0 0
        %728 = vmatpush.bf16.msra.mxu0 0
        %729 = vmatpush.bf16.msra.mxu0 %v720
        %730 = vmatpush.bf16.msra.mxu0 %v719
        %731 = vmatmul.bf16.gmra.mxu0 %v646
        %v732 = vpop.f32.mrf.mxu0
        %v733 = vadd.f32 %v628, %v732
        %v734 = vpop.f32.mrf.mxu0
        %735 = vdwg.mxu0
        %v736 = vld [vmem:[%s8] sm:$0xf]
        %v737 = vld [vmem:[%s8 + $0x4] sm:$0xf]
        %v738 = vld [vmem:[%s8 + $0x8] sm:$0xf]
        %v739 = vld [vmem:[%s8 + $0xc] sm:$0xf]
        %v740 = vld [vmem:[%s8 + $0x10] sm:$0xf]
        %v741 = vld [vmem:[%s8 + $0x14] sm:$0xf]
        %v742 = vld [vmem:[%s8 + $0x18] sm:$0xf]
        %v743 = vld [vmem:[%s8 + $0x1c] sm:$0xf]
        %v744 = vld [vmem:[%s8 + $0x20] sm:$0xf]
        %v745 = vld [vmem:[%s8 + $0x24] sm:$0xf]
        %v746 = vld [vmem:[%s8 + $0x28] sm:$0xf]
        %v747 = vld [vmem:[%s8 + $0x2c] sm:$0xf]
        %v748 = vld [vmem:[%s8 + $0x30] sm:$0xf]
        %v749 = vld [vmem:[%s8 + $0x34] sm:$0xf]
        %v750 = vld [vmem:[%s8 + $0x38] sm:$0xf]
        %v751 = vld [vmem:[%s8 + $0x3c] sm:$0xf]
        %v752 = vld [vmem:[%s9] sm:$0x1]
        %v753 = vld [vmem:[%s9 + $0x1] sm:$0x1]
        %v754 = vld [vmem:[%s9 + $0x2] sm:$0x1]
        %v755 = vld [vmem:[%s9 + $0x3] sm:$0x1]
        %v760 = vperm.slane %v752, 0
        %v761 = vperm.slane %v753, 0
        %v762 = vperm.slane %v754, 0
        %v763 = vperm.slane %v755, 0
        %v772 = vunpack.c.l.b16 %v736
        %v773 = vunpack.c.l.b16 %v737
        %v774 = vunpack.c.l.b16 %v738
        %v775 = vunpack.c.l.b16 %v739
        %v776 = vpack.c.b16 %v773, %v772
        %v777 = vpack.c.b16 %v775, %v774
        %v781 = vsel %vm509, %v464, 0
        %783 = vmatpush.bf16.msra.mxu0 0
        %784 = vmatpush.bf16.msra.mxu0 0
        %785 = vmatpush.bf16.msra.mxu0 0
        %786 = vmatpush.bf16.msra.mxu0 0
        %787 = vmatpush.bf16.msra.mxu0 0
        %788 = vmatpush.bf16.msra.mxu0 0
        %789 = vmatpush.bf16.msra.mxu0 %v777
        %790 = vmatpush.bf16.msra.mxu0 %v776
        %791 = vmatmul.bf16.gmra.mxu0 %v781
        %v792 = vpop.f32.mrf.mxu0
        %v793 = vadd.f32 %v760, %v792
        %v794 = vpop.f32.mrf.mxu0
        %795 = vdwg.mxu0
        %v800 = vunpack.c.l.b16 %v740
        %v801 = vunpack.c.l.b16 %v741
        %v802 = vunpack.c.l.b16 %v742
        %v803 = vunpack.c.l.b16 %v743
        %v804 = vpack.c.b16 %v801, %v800
        %v805 = vpack.c.b16 %v803, %v802
        %808 = vmatpush.bf16.msra.mxu0 0
        %809 = vmatpush.bf16.msra.mxu0 0
        %810 = vmatpush.bf16.msra.mxu0 0
        %811 = vmatpush.bf16.msra.mxu0 0
        %812 = vmatpush.bf16.msra.mxu0 0
        %813 = vmatpush.bf16.msra.mxu0 0
        %814 = vmatpush.bf16.msra.mxu0 %v805
        %815 = vmatpush.bf16.msra.mxu0 %v804
        %816 = vmatmul.bf16.gmra.mxu0 %v781
        %v817 = vpop.f32.mrf.mxu0
        %v818 = vadd.f32 %v761, %v817
        %v819 = vpop.f32.mrf.mxu0
        %820 = vdwg.mxu0
        %v825 = vunpack.c.l.b16 %v744
        %v826 = vunpack.c.l.b16 %v745
        %v827 = vunpack.c.l.b16 %v746
        %v828 = vunpack.c.l.b16 %v747
        %v829 = vpack.c.b16 %v826, %v825
        %v830 = vpack.c.b16 %v828, %v827
        %833 = vmatpush.bf16.msra.mxu0 0
        %834 = vmatpush.bf16.msra.mxu0 0
        %835 = vmatpush.bf16.msra.mxu0 0
        %836 = vmatpush.bf16.msra.mxu0 0
        %837 = vmatpush.bf16.msra.mxu0 0
        %838 = vmatpush.bf16.msra.mxu0 0
        %839 = vmatpush.bf16.msra.mxu0 %v830
        %840 = vmatpush.bf16.msra.mxu0 %v829
        %841 = vmatmul.bf16.gmra.mxu0 %v781
        %v842 = vpop.f32.mrf.mxu0
        %v843 = vadd.f32 %v762, %v842
        %v844 = vpop.f32.mrf.mxu0
        %845 = vdwg.mxu0
        %v850 = vunpack.c.l.b16 %v748
        %v851 = vunpack.c.l.b16 %v749
        %v852 = vunpack.c.l.b16 %v750
        %v853 = vunpack.c.l.b16 %v751
        %v854 = vpack.c.b16 %v851, %v850
        %v855 = vpack.c.b16 %v853, %v852
        %858 = vmatpush.bf16.msra.mxu0 0
        %859 = vmatpush.bf16.msra.mxu0 0
        %860 = vmatpush.bf16.msra.mxu0 0
        %861 = vmatpush.bf16.msra.mxu0 0
        %862 = vmatpush.bf16.msra.mxu0 0
        %863 = vmatpush.bf16.msra.mxu0 0
        %864 = vmatpush.bf16.msra.mxu0 %v855
        %865 = vmatpush.bf16.msra.mxu0 %v854
        %866 = vmatmul.bf16.gmra.mxu0 %v781
        %v867 = vpop.f32.mrf.mxu0
        %v868 = vadd.f32 %v763, %v867
        %v869 = vpop.f32.mrf.mxu0
        %870 = vdwg.mxu0
        %v871 = vpack.c.bf16 %v523, %v523
        %v872 = vpack.c.bf16 %v548, %v548
        %v873 = vpack.c.bf16 %v573, %v573
        %v874 = vpack.c.bf16 %v598, %v598
        %v875 = vpack.c.bf16 %v658, %v658
        %v876 = vpack.c.bf16 %v683, %v683
        %v877 = vpack.c.bf16 %v708, %v708
        %v878 = vpack.c.bf16 %v733, %v733
        %vm879 = vcmask 64512
        %v881 = vsel %vm879, %v871, 0
        %v884 = vsel %vm879, %v875, 0
        %886 = vmatpush.bf16.xpose.msra.mxu0 0
        %887 = vmatpush.bf16.xpose.msra.mxu0 0
        %888 = vmatpush.bf16.xpose.msra.mxu0 0
        %889 = vmatpush.bf16.xpose.msra.mxu0 0
        %890 = vmatpush.bf16.xpose.msra.mxu0 0
        %891 = vmatpush.bf16.xpose.msra.mxu0 0
        %892 = vmatpush.bf16.xpose.msra.mxu0 0
        %893 = vmatpush.bf16.xpose.msra.mxu0 %v884
        %894 = vmatmul.bf16.gmra.mxu0 %v881
        %v895 = vpop.f32.mrf.mxu0
        %v896 = vadd.f32 0.0, %v895
        %v897 = vpop.f32.mrf.mxu0
        %898 = vdwg.mxu0
        %v900 = vsel %vm879, %v872, 0
        %v903 = vsel %vm879, %v876, 0
        %905 = vmatpush.bf16.xpose.msra.mxu0 0
        %906 = vmatpush.bf16.xpose.msra.mxu0 0
        %907 = vmatpush.bf16.xpose.msra.mxu0 0
        %908 = vmatpush.bf16.xpose.msra.mxu0 0
        %909 = vmatpush.bf16.xpose.msra.mxu0 0
        %910 = vmatpush.bf16.xpose.msra.mxu0 0
        %911 = vmatpush.bf16.xpose.msra.mxu0 0
        %912 = vmatpush.bf16.xpose.msra.mxu0 %v903
        %913 = vmatmul.bf16.gmra.mxu0 %v900
        %v914 = vpop.f32.mrf.mxu0
        %v915 = vadd.f32 0.0, %v914
        %v916 = vpop.f32.mrf.mxu0
        %917 = vdwg.mxu0
        %v919 = vsel %vm879, %v873, 0
        %v922 = vsel %vm879, %v877, 0
        %924 = vmatpush.bf16.xpose.msra.mxu0 0
        %925 = vmatpush.bf16.xpose.msra.mxu0 0
        %926 = vmatpush.bf16.xpose.msra.mxu0 0
        %927 = vmatpush.bf16.xpose.msra.mxu0 0
        %928 = vmatpush.bf16.xpose.msra.mxu0 0
        %929 = vmatpush.bf16.xpose.msra.mxu0 0
        %930 = vmatpush.bf16.xpose.msra.mxu0 0
        %931 = vmatpush.bf16.xpose.msra.mxu0 %v922
        %932 = vmatmul.bf16.gmra.mxu0 %v919
        %v933 = vpop.f32.mrf.mxu0
        %v934 = vadd.f32 0.0, %v933
        %v935 = vpop.f32.mrf.mxu0
        %936 = vdwg.mxu0
        %v938 = vsel %vm879, %v874, 0
        %v941 = vsel %vm879, %v878, 0
        %943 = vmatpush.bf16.xpose.msra.mxu0 0
        %944 = vmatpush.bf16.xpose.msra.mxu0 0
        %945 = vmatpush.bf16.xpose.msra.mxu0 0
        %946 = vmatpush.bf16.xpose.msra.mxu0 0
        %947 = vmatpush.bf16.xpose.msra.mxu0 0
        %948 = vmatpush.bf16.xpose.msra.mxu0 0
        %949 = vmatpush.bf16.xpose.msra.mxu0 0
        %950 = vmatpush.bf16.xpose.msra.mxu0 %v941
        %951 = vmatmul.bf16.gmra.mxu0 %v938
        %v952 = vpop.f32.mrf.mxu0
        %v953 = vadd.f32 0.0, %v952
        %v954 = vpop.f32.mrf.mxu0
        %955 = vdwg.mxu0
        %v956 = vmul.f32 %v896, 0.35355338
        %v957 = vmul.f32 %v915, 0.35355338
        %v958 = vmul.f32 %v934, 0.35355338
        %v959 = vmul.f32 %v953, 0.35355338
        %v960 = vmul.f32 %v461, -1e+09
        %v962 = vperm.slane %v960, 0
        %v964 = vadd.f32 %v956, %v962
        %v965 = vadd.f32 %v957, %v962
        %v966 = vadd.f32 %v958, %v962
        %v967 = vadd.f32 %v959, %v962
        %v968 = vsel %vm879, %v964, -inf
        %969 = vmax.xlane.f32.xlu0 %v968
        %v970 = vpop.xlane.xlu0 %969
        %v971 = vsel %vm879, %v965, -inf
        %972 = vmax.xlane.f32.xlu0 %v971
        %v973 = vpop.xlane.xlu0 %972
        %v974 = vsel %vm879, %v966, -inf
        %975 = vmax.xlane.f32.xlu0 %v974
        %v976 = vpop.xlane.xlu0 %975
        %v977 = vsel %vm879, %v967, -inf
        %978 = vmax.xlane.f32.xlu0 %v977
        %v979 = vpop.xlane.xlu0 %978
        %v980 = vsub.f32 %v964, %v970
        %v981 = vsub.f32 %v965, %v973
        %v982 = vsub.f32 %v966, %v976
        %v983 = vsub.f32 %v967, %v979
        %v984 = vmul.f32 %v980, 1.442695
        %v985 = vpow.pop %v984
        %v986 = vmul.f32 %v981, 1.442695
        %v987 = vpow.pop %v986
        %v988 = vmul.f32 %v982, 1.442695
        %v989 = vpow.pop %v988
        %v990 = vmul.f32 %v983, 1.442695
        %v991 = vpow.pop %v990
        %v992 = vsel %vm879, %v985, 0.0
        %993 = vadd.xlane.f32.xlu0 %v992
        %v994 = vpop.xlane.xlu0 %993
        %v995 = vsel %vm879, %v987, 0.0
        %996 = vadd.xlane.f32.xlu0 %v995
        %v997 = vpop.xlane.xlu0 %996
        %v998 = vsel %vm879, %v989, 0.0
        %999 = vadd.xlane.f32.xlu0 %v998
        %v1000 = vpop.xlane.xlu0 %999
        %v1001 = vsel %vm879, %v991, 0.0
        %1002 = vadd.xlane.f32.xlu0 %v1001
        %v1003 = vpop.xlane.xlu0 %1002
        %v1004 = vrcp.pop %v994
        %v1005 = vrcp.pop %v997
        %v1006 = vrcp.pop %v1000
        %v1007 = vrcp.pop %v1003
        %v1008 = vmul.f32 %v985, %v1004
        %v1009 = vmul.f32 %v987, %v1005
        %v1010 = vmul.f32 %v989, %v1006
        %v1011 = vmul.f32 %v991, %v1007
        %v1012 = vpack.c.bf16 %v1008, %v1008
        %v1013 = vpack.c.bf16 %v1009, %v1009
        %v1014 = vpack.c.bf16 %v1010, %v1010
        %v1015 = vpack.c.bf16 %v1011, %v1011
        %v1016 = vpack.c.bf16 %v793, %v793
        %v1017 = vpack.c.bf16 %v818, %v818
        %v1018 = vpack.c.bf16 %v843, %v843
        %v1019 = vpack.c.bf16 %v868, %v868
        %v1021 = vsel %vm879, %v1012, 0
        %vm1023 = vcmask 1043456
        %v1025 = vsel %vm1023, %v1016, 0
        %1027 = vmatpush.bf16.msra.mxu0 0
        %1028 = vmatpush.bf16.msra.mxu0 0
        %1029 = vmatpush.bf16.msra.mxu0 0
        %1030 = vmatpush.bf16.msra.mxu0 0
        %1031 = vmatpush.bf16.msra.mxu0 0
        %1032 = vmatpush.bf16.msra.mxu0 0
        %1033 = vmatpush.bf16.msra.mxu0 0
        %1034 = vmatpush.bf16.msra.mxu0 %v1025
        %1035 = vmatmul.bf16.gmra.mxu0 %v1021
        %v1036 = vpop.f32.mrf.mxu0
        %v1037 = vadd.f32 0.0, %v1036
        %v1038 = vpop.f32.mrf.mxu0
        %1039 = vdwg.mxu0
        %v1041 = vsel %vm879, %v1013, 0
        %v1044 = vsel %vm1023, %v1017, 0
        %1046 = vmatpush.bf16.msra.mxu0 0
        %1047 = vmatpush.bf16.msra.mxu0 0
        %1048 = vmatpush.bf16.msra.mxu0 0
        %1049 = vmatpush.bf16.msra.mxu0 0
        %1050 = vmatpush.bf16.msra.mxu0 0
        %1051 = vmatpush.bf16.msra.mxu0 0
        %1052 = vmatpush.bf16.msra.mxu0 0
        %1053 = vmatpush.bf16.msra.mxu0 %v1044
        %1054 = vmatmul.bf16.gmra.mxu0 %v1041
        %v1055 = vpop.f32.mrf.mxu0
        %v1056 = vadd.f32 0.0, %v1055
        %v1057 = vpop.f32.mrf.mxu0
        %1058 = vdwg.mxu0
        %v1060 = vsel %vm879, %v1014, 0
        %v1063 = vsel %vm1023, %v1018, 0
        %1065 = vmatpush.bf16.msra.mxu0 0
        %1066 = vmatpush.bf16.msra.mxu0 0
        %1067 = vmatpush.bf16.msra.mxu0 0
        %1068 = vmatpush.bf16.msra.mxu0 0
        %1069 = vmatpush.bf16.msra.mxu0 0
        %1070 = vmatpush.bf16.msra.mxu0 0
        %1071 = vmatpush.bf16.msra.mxu0 0
        %1072 = vmatpush.bf16.msra.mxu0 %v1063
        %1073 = vmatmul.bf16.gmra.mxu0 %v1060
        %v1074 = vpop.f32.mrf.mxu0
        %v1075 = vadd.f32 0.0, %v1074
        %v1076 = vpop.f32.mrf.mxu0
        %1077 = vdwg.mxu0
        %v1079 = vsel %vm879, %v1015, 0
        %v1082 = vsel %vm1023, %v1019, 0
        %1084 = vmatpush.bf16.msra.mxu0 0
        %1085 = vmatpush.bf16.msra.mxu0 0
        %1086 = vmatpush.bf16.msra.mxu0 0
        %1087 = vmatpush.bf16.msra.mxu0 0
        %1088 = vmatpush.bf16.msra.mxu0 0
        %1089 = vmatpush.bf16.msra.mxu0 0
        %1090 = vmatpush.bf16.msra.mxu0 0
        %1091 = vmatpush.bf16.msra.mxu0 %v1082
        %1092 = vmatmul.bf16.gmra.mxu0 %v1079
        %v1093 = vpop.f32.mrf.mxu0
        %v1094 = vadd.f32 0.0, %v1093
        %v1095 = vpop.f32.mrf.mxu0
        %1096 = vdwg.mxu0
        %v1097 = vpack.c.bf16 %v1037, %v1037
        %v1098 = vpack.c.bf16 %v1056, %v1056
        %v1099 = vpack.c.bf16 %v1075, %v1075
        %v1100 = vpack.c.bf16 %v1094, %v1094
        %v1101 = vld [vmem:[%s10] sm:$0xf]
        %v1102 = vld [vmem:[%s10 + $0x4] sm:$0xf]
        %v1103 = vld [vmem:[%s10 + $0x8] sm:$0xf]
        %v1104 = vld [vmem:[%s10 + $0xc] sm:$0xf]
        %v1106 = vsel %vm879, %v1097, 0
        %v1109 = vsel %vm1023, %v1101, 0
        %1111 = vmatpush.bf16.msra.mxu0 0
        %1112 = vmatpush.bf16.msra.mxu0 0
        %1113 = vmatpush.bf16.msra.mxu0 0
        %1114 = vmatpush.bf16.msra.mxu0 0
        %1115 = vmatpush.bf16.msra.mxu0 0
        %1116 = vmatpush.bf16.msra.mxu0 0
        %1117 = vmatpush.bf16.msra.mxu0 0
        %1118 = vmatpush.bf16.msra.mxu0 %v1109
        %1119 = vmatmul.bf16.gmra.mxu0 %v1106
        %v1120 = vpop.f32.mrf.mxu0
        %v1121 = vadd.f32 0.0, %v1120
        %v1122 = vpop.f32.mrf.mxu0
        %1123 = vdwg.mxu0
        %v1125 = vsel %vm879, %v1098, 0
        %v1128 = vsel %vm1023, %v1102, 0
        %1130 = vmatpush.bf16.msra.mxu0 0
        %1131 = vmatpush.bf16.msra.mxu0 0
        %1132 = vmatpush.bf16.msra.mxu0 0
        %1133 = vmatpush.bf16.msra.mxu0 0
        %1134 = vmatpush.bf16.msra.mxu0 0
        %1135 = vmatpush.bf16.msra.mxu0 0
        %1136 = vmatpush.bf16.msra.mxu0 0
        %1137 = vmatpush.bf16.msra.mxu0 %v1128
        %1138 = vmatmul.bf16.gmra.mxu0 %v1125
        %v1139 = vpop.f32.mrf.mxu0
        %v1140 = vadd.f32 0.0, %v1139
        %v1141 = vpop.f32.mrf.mxu0
        %1142 = vdwg.mxu0
        %v1144 = vsel %vm879, %v1099, 0
        %v1147 = vsel %vm1023, %v1103, 0
        %1149 = vmatpush.bf16.msra.mxu0 0
        %1150 = vmatpush.bf16.msra.mxu0 0
        %1151 = vmatpush.bf16.msra.mxu0 0
        %1152 = vmatpush.bf16.msra.mxu0 0
        %1153 = vmatpush.bf16.msra.mxu0 0
        %1154 = vmatpush.bf16.msra.mxu0 0
        %1155 = vmatpush.bf16.msra.mxu0 0
        %1156 = vmatpush.bf16.msra.mxu0 %v1147
        %1157 = vmatmul.bf16.gmra.mxu0 %v1144
        %v1158 = vpop.f32.mrf.mxu0
        %v1159 = vadd.f32 0.0, %v1158
        %v1160 = vpop.f32.mrf.mxu0
        %1161 = vdwg.mxu0
        %v1163 = vsel %vm879, %v1100, 0
        %v1166 = vsel %vm1023, %v1104, 0
        %1168 = vmatpush.bf16.msra.mxu0 0
        %1169 = vmatpush.bf16.msra.mxu0 0
        %1170 = vmatpush.bf16.msra.mxu0 0
        %1171 = vmatpush.bf16.msra.mxu0 0
        %1172 = vmatpush.bf16.msra.mxu0 0
        %1173 = vmatpush.bf16.msra.mxu0 0
        %1174 = vmatpush.bf16.msra.mxu0 0
        %1175 = vmatpush.bf16.msra.mxu0 %v1166
        %1176 = vmatmul.bf16.gmra.mxu0 %v1163
        %v1177 = vpop.f32.mrf.mxu0
        %v1178 = vadd.f32 0.0, %v1177
        %v1179 = vpop.f32.mrf.mxu0
        %1180 = vdwg.mxu0
        %v1181 = vsel %vm509, %v1121, 0.0
        %v1182 = vsel %vm509, %v1140, 0.0
        %v1183 = vadd.f32 %v1181, %v1182
        %v1184 = vsel %vm509, %v1159, 0.0
        %v1185 = vadd.f32 %v1183, %v1184
        %v1186 = vsel %vm509, %v1178, 0.0
        %v1187 = vadd.f32 %v1185, %v1186
        %v1188 = vld [vmem:[%s11] sm:$0x1]
        %v1190 = vperm.slane %v1188, 0
        %v1192 = vadd.f32 %v1187, %v1190
        %1193 = vst.msk [vmem:[%s441] sm:$0xff] %vm509, %v1192
        %s1194 = sand.u32 %s306, 1
        %s1195 = scalar_lea.sflag [#allocation3], %s1194
        %s1196 = sand.u32 %s306, 1
        %s1197 = smul.addr %s1196, 8
        %s1198 = scalar_lea.vmem [#allocation2], %s1197
        // Predicated region
        $region69: #{tpu_custom_call.1} parent=67 // pred_check
          %p1199 = pneg %p316
        $region70: #{tpu_custom_call.1} parent=67 // pred_check_branch
          %1201 = sbr.rel (%p1199) target = $region72
        $region71: #{tpu_custom_call.1} parent=67 // pred_region
          %1203 = vsyncadd %s1195, 0
          %s1204 = smul.addr %s26, 8
          %s1205 = scalar_lea.hbm %s12, %s1204
          %s1207 = sshll.u32 %s1198, 4
          %s1208 = int_to_ptr.vmem [resolvable:$true] %s1207
          %s1209 = sshll.u32 %s1205, 4
          %s1210 = int_to_ptr.hbm [resolvable:$true] %s1209
          %1212 = dma.vmem_to_hbm [thread:$0]  %s1208, 128, %s1210, %s1195
        $region72: #{tpu_custom_call.1} parent=67 // pred_fallthru
          _
      $region68: #{tpu_custom_call.1} parent=5 // pred_fallthru
        _
      %p1213 = scmp.le.s32.totalorder 2, %s21
      // Predicated region
      $region73: #{tpu_custom_call.1} parent=5 // pred_check
        %p1214 = pneg %p1213
      $region74: #{tpu_custom_call.1} parent=5 // pred_check_branch
        %1216 = sbr.rel (%p1214) target = $region76
      $region75: #{tpu_custom_call.1} parent=5 // pred_region
        %s1217 = ssub.s32 %s21, 2
        // Predicated region
        $region77: #{tpu_custom_call.1} parent=75 // pred_check
          %p1218 = pneg %p322
        $region78: #{tpu_custom_call.1} parent=75 // pred_check_branch
          %1220 = sbr.rel (%p1218) target = $region80
        $region79: #{tpu_custom_call.1} parent=75 // pred_region
          %s1221 = sand.u32 %s307, 1
          %s1222 = scalar_lea.sflag [#allocation3], %s1221
          %s1223 = sand.u32 %s307, 1
          %s1224 = smul.addr %s1223, 8
          %s1225 = scalar_lea.vmem [#allocation2], %s1224
          %1227 = dma.done %s1222, 128
        $region80: #{tpu_custom_call.1} parent=75 // pred_fallthru
          _
      $region76: #{tpu_custom_call.1} parent=5 // pred_fallthru
        _
    $region6: #{tpu_custom_call.1} parent=1 // loop_footer
      %s25 = sadd.s32 1, %s21
    $region7: #{tpu_custom_call.1} parent=1 // loop_footer_branch
      %20 = sbr.rel target = $region3
    $region8: #{tpu_custom_call.1} parent=1 // loop_exit
      _
    %1228 = vsyncpa [#allocation3], 1
    %s1229 = scalar_lea.sflag [#allocation3], 1
    %1230 = vsyncpa %s1229, 1

</llo_original>
